<compile_context>
chip_gen: v5e
topology: v5e:2x2
jax: 0.10.0
libtpu: 0.0.40
codegen_flags: <defaults>
</compile_context>

<pallas_src>
import functools
import math

import jax
import jax.numpy as jnp
from jax import lax
from jax.experimental import pallas as pl
from jax.experimental.pallas import tpu as pltpu


def _round_up(x, m):
    return ((x + m - 1) // m) * m


def _critic_kernel(s_ref, a_ref, w1s_ref, w1a_ref, b1_ref, w2_ref, b2_ref,
                   w3_ref, b3_ref, o_ref):
    # Layer 1: fused concat via split-K (two small MXU pushes).
    h1 = (jnp.dot(s_ref[...], w1s_ref[...], preferred_element_type=jnp.float32)
          + jnp.dot(a_ref[...], w1a_ref[...], preferred_element_type=jnp.float32)
          + b1_ref[...])
    h1 = jnp.maximum(h1, 0.0)

    # Layer 2: (tm, H) @ (H, H) on the MXU.
    h2 = jnp.dot(h1, w2_ref[...], preferred_element_type=jnp.float32) + b2_ref[...]
    h2 = jnp.maximum(h2, 0.0)

    # Layer 3 (output width 1): contract H and leave the batch dim in the LANE
    # axis -> lane-dense (1, tm) output row instead of a masked (tm, 1) column.
    q = lax.dot_general(w3_ref[...], h2,
                        dimension_numbers=(((1,), (1,)), ((), ())),
                        preferred_element_type=jnp.float32)
    o_ref[...] = (q + b3_ref[0]).astype(o_ref.dtype)


@functools.partial(jax.jit, static_argnames=("block_m",))
def critic_forward(state, action, params, *, block_m=256):
    """state: (B, S), action: (B, A). Returns Q-values (B, 1)."""
    w1, b1, w2, b2, w3, b3 = params
    B, S = state.shape
    A = action.shape[1]
    H = w1.shape[1]

    # Split-K weights for the fused concat; row-vector form of the last layer.
    w1s = w1[:S]                      # (S, H)
    w1a = w1[S:]                      # (A, H)
    w3_row = w3.reshape(1, H)         # (1, H)
    b3_s = b3.reshape(1)              # (1,) SMEM scalar

    # Batch tile: big enough to amortize per-grid-step overhead and fill the
    # MXU M dim, multiple of 8 sublanes.  NO input padding: the last grid
    # block is a partial edge block whose garbage rows only affect garbage
    # output rows (sliced away below).
    tm = min(block_m, _round_up(B, 8))
    if B >= 256:
        # Keep >= 2 grid steps (and >= 128 lane-dense rows per step) so the
        # "parallel" batch axis can shard across both TensorCores on v7x.
        tm = min(tm, max(128, _round_up(pl.cdiv(B, 2), 8)))

    grid_m = pl.cdiv(B, tm)

    in_specs = [
        pl.BlockSpec((tm, S), lambda i: (i, 0)),            # state tile (pipelined)
        pl.BlockSpec((tm, A), lambda i: (i, 0)),            # action tile (pipelined)
        pl.BlockSpec((S, H), lambda i: (0, 0)),             # W1[:S]   (VMEM-resident)
        pl.BlockSpec((A, H), lambda i: (0, 0)),             # W1[S:]   (VMEM-resident)
        pl.BlockSpec((1, H), lambda i: (0, 0)),             # b1       (resident)
        pl.BlockSpec((H, H), lambda i: (0, 0)),             # W2       (resident)
        pl.BlockSpec((1, H), lambda i: (0, 0)),             # b2       (resident)
        pl.BlockSpec((1, H), lambda i: (0, 0)),             # W3 row   (resident)
        pl.BlockSpec(memory_space=pltpu.MemorySpace.SMEM),  # b3 scalar
    ]
    # Lane-dense output: one (1, tm) row per grid step.
    out_specs = pl.BlockSpec((1, tm), lambda i: (i, 0))

    out = pl.pallas_call(
        _critic_kernel,
        out_shape=jax.ShapeDtypeStruct((grid_m, tm), jnp.float32),
        grid=(grid_m,),
        in_specs=in_specs,
        out_specs=out_specs,
        compiler_params=pltpu.CompilerParams(
            dimension_semantics=("parallel",)),
    )(state, action, w1s, w1a, b1, w2, b2, w3_row, b3_s)

    # (grid_m, tm) row-major -> flatten matches batch order; drop tail rows.
    return out.reshape(-1)[:B].reshape(B, 1)


def init_critic_params(key, state_dim, action_dim, hidden_dim=256):
    """Deterministic init mimicking PyTorch nn.Linear default U(-1/sqrt(fan_in), +)."""
    dims = [(state_dim + action_dim, hidden_dim),
            (hidden_dim, hidden_dim),
            (hidden_dim, 1)]
    params = []
    for (fan_in, fan_out) in dims:
        key, kw, kb = jax.random.split(key, 3)
        bound = 1.0 / math.sqrt(fan_in)
        w = jax.random.uniform(kw, (fan_in, fan_out), jnp.float32, -bound, bound)
        b = jax.random.uniform(kb, (1, fan_out), jnp.float32, -bound, bound)
        params.extend([w, b])
    return tuple(params)


def critic_reference(state, action, params):
    w1, b1, w2, b2, w3, b3 = params
    x = jnp.concatenate([state, action], axis=1)
    h1 = jnp.maximum(x @ w1 + b1, 0.0)
    h2 = jnp.maximum(h1 @ w2 + b2, 0.0)
    return h2 @ w3 + b3


if __name__ == "__main__":
    key = jax.random.PRNGKey(0)
    k_state, k_action, k_params = jax.random.split(key, 3)

    batch = 8
    state_dim = 12
    action_dim = 4
    hidden_dim = 32

    state = jax.random.normal(k_state, (batch, state_dim), jnp.float32)
    action = jax.random.normal(k_action, (batch, action_dim), jnp.float32)
    params = init_critic_params(k_params, state_dim, action_dim, hidden_dim)

    q = critic_forward(state, action, params)
    jax.block_until_ready(q)

    q_ref = critic_reference(state, action, params)
    assert q.shape == (batch, 1), q.shape
    assert jnp.allclose(q, q_ref, atol=1e-5, rtol=1e-5), (q, q_ref)

    # Single-tile path with a non-multiple-of-128 batch (no input padding).
    big_b = 200
    ks2, ka2 = jax.random.split(jax.random.PRNGKey(1))
    state2 = jax.random.normal(ks2, (big_b, state_dim), jnp.float32)
    action2 = jax.random.normal(ka2, (big_b, action_dim), jnp.float32)
    q2 = critic_forward(state2, action2, params)
    jax.block_until_ready(q2)
    q2_ref = critic_reference(state2, action2, params)
    assert q2.shape == (big_b, 1), q2.shape
    assert jnp.allclose(q2, q2_ref, atol=1e-5, rtol=1e-5)

    # Multi-step grid with a partial edge block (B=300, tm=128 -> 3 steps).
    b3_ = 300
    ks3, ka3 = jax.random.split(jax.random.PRNGKey(2))
    state3 = jax.random.normal(ks3, (b3_, state_dim), jnp.float32)
    action3 = jax.random.normal(ka3, (b3_, action_dim), jnp.float32)
    q3 = critic_forward(state3, action3, params, block_m=128)
    jax.block_until_ready(q3)
    q3_ref = critic_reference(state3, action3, params)
    assert q3.shape == (b3_, 1), q3.shape
    assert jnp.allclose(q3, q3_ref, atol=1e-5, rtol=1e-5)

    print("KERNEL_OK")
</pallas_src>

<mosaic_0001>
module attributes {stable_mosaic.version = 11 : i64} {
  func.func @_critic_kernel(%arg0: i32, %arg1: memref<8x12xf32, #tpu.memory_space<vmem>>, %arg2: memref<8x4xf32, #tpu.memory_space<vmem>>, %arg3: memref<12x32xf32, #tpu.memory_space<vmem>>, %arg4: memref<4x32xf32, #tpu.memory_space<vmem>>, %arg5: memref<1x32xf32, #tpu.memory_space<vmem>>, %arg6: memref<32x32xf32, #tpu.memory_space<vmem>>, %arg7: memref<1x32xf32, #tpu.memory_space<vmem>>, %arg8: memref<1x32xf32, #tpu.memory_space<vmem>>, %arg9: memref<1xf32, #tpu.memory_space<smem>>, %arg10: memref<1x8xf32, #tpu.memory_space<vmem>>) attributes {dimension_semantics = [#tpu.dimension_semantics<parallel>], iteration_bounds = array<i64: 1>, scalar_prefetch = 0 : i64, scratch_operands = 0 : i64, tpu.core_type = #tpu.core_type<tc>, window_params = [{transform_indices = @transform_0, window_bounds = array<i64: 8, 12>}, {transform_indices = @transform_1, window_bounds = array<i64: 8, 4>}, {pipeline_mode = #tpu.pipeline_mode<synchronous>, transform_indices = @transform_2, window_bounds = array<i64: 12, 32>}, {pipeline_mode = #tpu.pipeline_mode<synchronous>, transform_indices = @transform_3, window_bounds = array<i64: 4, 32>}, {pipeline_mode = #tpu.pipeline_mode<synchronous>, transform_indices = @transform_4, window_bounds = array<i64: 1, 32>}, {pipeline_mode = #tpu.pipeline_mode<synchronous>, transform_indices = @transform_5, window_bounds = array<i64: 32, 32>}, {pipeline_mode = #tpu.pipeline_mode<synchronous>, transform_indices = @transform_6, window_bounds = array<i64: 1, 32>}, {pipeline_mode = #tpu.pipeline_mode<synchronous>, transform_indices = @transform_7, window_bounds = array<i64: 1, 32>}, {transform_indices = @transform_8, window_bounds = array<i64: 1>}, {transform_indices = @transform_9, window_bounds = array<i64: 1, 8>}]} {
    %c0 = arith.constant 0 : index
    %c0_0 = arith.constant 0 : index
    %0 = vector.load %arg1[%c0, %c0_0] : memref<8x12xf32, #tpu.memory_space<vmem>>, vector<8x12xf32>
    %c0_1 = arith.constant 0 : index
    %c0_2 = arith.constant 0 : index
    %1 = vector.load %arg3[%c0_1, %c0_2] : memref<12x32xf32, #tpu.memory_space<vmem>>, vector<12x32xf32>
    %cst = arith.constant dense<0.000000e+00> : vector<8x32xf32>
    %2 = tpu.matmul %0, %1, %cst {dimension_numbers = #tpu.dot_dimension_numbers<[1], [0], [0], [1], [0, 0, 1, 1], [], []>} : vector<8x12xf32>, vector<12x32xf32>, vector<8x32xf32> -> vector<8x32xf32>
    %c0_3 = arith.constant 0 : index
    %c0_4 = arith.constant 0 : index
    %3 = vector.load %arg2[%c0_3, %c0_4] : memref<8x4xf32, #tpu.memory_space<vmem>>, vector<8x4xf32>
    %c0_5 = arith.constant 0 : index
    %c0_6 = arith.constant 0 : index
    %4 = vector.load %arg4[%c0_5, %c0_6] : memref<4x32xf32, #tpu.memory_space<vmem>>, vector<4x32xf32>
    %cst_7 = arith.constant dense<0.000000e+00> : vector<8x32xf32>
    %5 = tpu.matmul %3, %4, %cst_7 {dimension_numbers = #tpu.dot_dimension_numbers<[1], [0], [0], [1], [0, 0, 1, 1], [], []>} : vector<8x4xf32>, vector<4x32xf32>, vector<8x32xf32> -> vector<8x32xf32>
    %6 = arith.addf %2, %5 : vector<8x32xf32>
    %c0_8 = arith.constant 0 : index
    %c0_9 = arith.constant 0 : index
    %7 = vector.load %arg5[%c0_8, %c0_9] : memref<1x32xf32, #tpu.memory_space<vmem>>, vector<1x32xf32>
    %8 = vector.broadcast %7 : vector<1x32xf32> to vector<8x32xf32>
    %9 = arith.addf %6, %8 : vector<8x32xf32>
    %cst_10 = arith.constant 0.000000e+00 : f32
    %10 = vector.broadcast %cst_10 : f32 to vector<8x32xf32>
    %11 = arith.maximumf %9, %10 : vector<8x32xf32>
    %c0_11 = arith.constant 0 : index
    %c0_12 = arith.constant 0 : index
    %12 = vector.load %arg6[%c0_11, %c0_12] : memref<32x32xf32, #tpu.memory_space<vmem>>, vector<32x32xf32>
    %cst_13 = arith.constant dense<0.000000e+00> : vector<8x32xf32>
    %13 = tpu.matmul %11, %12, %cst_13 {dimension_numbers = #tpu.dot_dimension_numbers<[1], [0], [0], [1], [0, 0, 1, 1], [], []>} : vector<8x32xf32>, vector<32x32xf32>, vector<8x32xf32> -> vector<8x32xf32>
    %c0_14 = arith.constant 0 : index
    %c0_15 = arith.constant 0 : index
    %14 = vector.load %arg7[%c0_14, %c0_15] : memref<1x32xf32, #tpu.memory_space<vmem>>, vector<1x32xf32>
    %15 = vector.broadcast %14 : vector<1x32xf32> to vector<8x32xf32>
    %16 = arith.addf %13, %15 : vector<8x32xf32>
    %cst_16 = arith.constant 0.000000e+00 : f32
    %17 = vector.broadcast %cst_16 : f32 to vector<8x32xf32>
    %18 = arith.maximumf %16, %17 : vector<8x32xf32>
    %c0_17 = arith.constant 0 : index
    %c0_18 = arith.constant 0 : index
    %19 = vector.load %arg8[%c0_17, %c0_18] : memref<1x32xf32, #tpu.memory_space<vmem>>, vector<1x32xf32>
    %cst_19 = arith.constant dense<0.000000e+00> : vector<1x8xf32>
    %20 = tpu.matmul %19, %18, %cst_19 {dimension_numbers = #tpu.dot_dimension_numbers<[1], [1], [0], [0], [0, 0, 1, 0], [], []>} : vector<1x32xf32>, vector<8x32xf32>, vector<1x8xf32> -> vector<1x8xf32>
    %c0_20 = arith.constant 0 : index
    %21 = memref.load %arg9[%c0_20] : memref<1xf32, #tpu.memory_space<smem>>
    %22 = vector.broadcast %21 : f32 to vector<1x8xf32>
    %23 = arith.addf %20, %22 : vector<1x8xf32>
    %c0_21 = arith.constant 0 : index
    %c0_22 = arith.constant 0 : index
    %24 = vector.load %arg10[%c0_21, %c0_22] : memref<1x8xf32, #tpu.memory_space<vmem>>, vector<1x8xf32>
    tpu.vector_store %arg10[%c0_21, %c0_22], %23 {strides = array<i32>} : memref<1x8xf32, #tpu.memory_space<vmem>>, vector<1x8xf32>,
    return
  }
  func.func @transform_0(%arg0: i32) -> (i32, i32) {
    %c0_i32 = arith.constant 0 : i32
    %c0_i32_0 = arith.constant 0 : i32
    return %arg0, %c0_i32 : i32, i32
  }
  func.func @transform_1(%arg0: i32) -> (i32, i32) {
    %c0_i32 = arith.constant 0 : i32
    %c0_i32_0 = arith.constant 0 : i32
    return %arg0, %c0_i32 : i32, i32
  }
  func.func @transform_2(%arg0: i32) -> (i32, i32) {
    %c0_i32 = arith.constant 0 : i32
    %c0_i32_0 = arith.constant 0 : i32
    %c0_i32_1 = arith.constant 0 : i32
    return %c0_i32, %c0_i32_0 : i32, i32
  }
  func.func @transform_3(%arg0: i32) -> (i32, i32) {
    %c0_i32 = arith.constant 0 : i32
    %c0_i32_0 = arith.constant 0 : i32
    %c0_i32_1 = arith.constant 0 : i32
    return %c0_i32, %c0_i32_0 : i32, i32
  }
  func.func @transform_4(%arg0: i32) -> (i32, i32) {
    %c0_i32 = arith.constant 0 : i32
    %c0_i32_0 = arith.constant 0 : i32
    %c0_i32_1 = arith.constant 0 : i32
    return %c0_i32, %c0_i32_0 : i32, i32
  }
  func.func @transform_5(%arg0: i32) -> (i32, i32) {
    %c0_i32 = arith.constant 0 : i32
    %c0_i32_0 = arith.constant 0 : i32
    %c0_i32_1 = arith.constant 0 : i32
    return %c0_i32, %c0_i32_0 : i32, i32
  }
  func.func @transform_6(%arg0: i32) -> (i32, i32) {
    %c0_i32 = arith.constant 0 : i32
    %c0_i32_0 = arith.constant 0 : i32
    %c0_i32_1 = arith.constant 0 : i32
    return %c0_i32, %c0_i32_0 : i32, i32
  }
  func.func @transform_7(%arg0: i32) -> (i32, i32) {
    %c0_i32 = arith.constant 0 : i32
    %c0_i32_0 = arith.constant 0 : i32
    %c0_i32_1 = arith.constant 0 : i32
    return %c0_i32, %c0_i32_0 : i32, i32
  }
  func.func @transform_8(%arg0: i32) -> i32 {
    %c0_i32 = arith.constant 0 : i32
    %c0_i32_0 = arith.constant 0 : i32
    return %c0_i32 : i32
  }
  func.func @transform_9(%arg0: i32) -> (i32, i32) {
    %c0_i32 = arith.constant 0 : i32
    %c0_i32_0 = arith.constant 0 : i32
    return %arg0, %c0_i32 : i32, i32
  }
}

</mosaic_0001>

<llo_original>
// kernel: critic_forward.1
$region0: #{critic_forward.1}
  #allocation0 [shape = 'u32[]', space=smem, size = 0x4, offset = 0x4, fixed_abs, tag = 'smem constant byte address 0x4 - core index']
  #allocation1 [shape = 'u32[72,128]{1,0:T(1,128)}', space=vmem, size = 0x9000, scoped, tag = 'internal scratch']
  #allocation2 [shape = 'f32[1]{0:T(128)S(6)}', space=smem, size = 0x200, scoped, tag = 'scoped memory for critic_forward.1']
  %s0 = inlined_call_operand.hbm [shape: f32[8,12], index: 0, kind: input, shape index: {}]
  %s1 = inlined_call_operand.vmem [shape: f32[8,4], index: 1, kind: input, shape index: {}]
  %s2 = inlined_call_operand.vmem [shape: f32[12,32], index: 2, kind: input, shape index: {}]
  %s3 = inlined_call_operand.vmem [shape: f32[4,32], index: 3, kind: input, shape index: {}]
  %s4 = inlined_call_operand.vmem [shape: f32[1,32], index: 4, kind: input, shape index: {}]
  %s5 = inlined_call_operand.hbm [shape: f32[32,32], index: 5, kind: input, shape index: {}]
  %s6 = inlined_call_operand.vmem [shape: f32[1,32], index: 6, kind: input, shape index: {}]
  %s7 = inlined_call_operand.vmem [shape: f32[1,32], index: 7, kind: input, shape index: {}]
  %s8 = inlined_call_operand.<no memory space> [shape: f32[1], index: 8, kind: input, shape index: {}]
  %s9 = inlined_call_operand.hbm [shape: f32[1,8], index: 9, kind: output, shape index: {}]
  %s10 = sld [smem:[#allocation0]]
  $region54: #{critic_forward.1} parent=0
    _
  %s12 = ssub.s32 1, %s10
  %s13 = scalar_select 0, %s12, %s10
  %14 = sst [smem:[#allocation2]] %s8
  $region1: #{critic_forward.1} parent=0
    #allocation3 [shape = 'u8[4096]{0}', space=vmem, size = 0x1000, scoped, tag = 'input window, operand 0, single buffered']
    #allocation4 [shape = 's32[1]{0}', space=sflag, size = 0x4, scoped, tag = 'scoped memory for critic_forward.1']
    #allocation5 [shape = 's32[1]{0}', space=sflag, size = 0x4, scoped, tag = 'scoped memory for critic_forward.1']
    #allocation6 [shape = 'u8[16384]{0}', space=vmem, size = 0x4000, scoped, tag = 'input window, operand 5, single buffered']
    #allocation7 [shape = 's32[1]{0}', space=sflag, size = 0x4, scoped, tag = 'scoped memory for critic_forward.1']
    #allocation8 [shape = 'u8[512]{0}', space=vmem, size = 0x400, scoped, tag = 'output window, operand 0, single buffered']
    %15 = vsyncpa [#allocation4], 0
    %16 = vsyncpa [#allocation7], 0
    %17 = vsyncpa [#allocation5], 0
    // Predicated region
    $region2: #{critic_forward.1} parent=1 // pred_check
      _
    $region3: #{critic_forward.1} parent=1 // pred_check_branch
      %19 = sbr.rel (0) target = $region5
    $region4: #{critic_forward.1} parent=1 // pred_region
      %21 = vsyncadd [#allocation4], 0
      %s23 = sshll.u32 %s0, 4
      %s24 = int_to_ptr.hbm [resolvable:$true] %s23
      %s25 = sshll.u32 [#allocation3], 4
      %s26 = int_to_ptr.vmem [resolvable:$true] %s25
      %28 = dma.hbm_to_vmem [thread:$0]  %s24, 128, %s26, [#allocation4]
    $region5: #{critic_forward.1} parent=1 // pred_fallthru
      _
    // Predicated region
    $region6: #{critic_forward.1} parent=1 // pred_check
      _
    $region7: #{critic_forward.1} parent=1 // pred_check_branch
      %30 = sbr.rel (0) target = $region9
    $region8: #{critic_forward.1} parent=1 // pred_region
      _
    $region9: #{critic_forward.1} parent=1 // pred_fallthru
      _
    // Predicated region
    $region10: #{critic_forward.1} parent=1 // pred_check
      _
    $region11: #{critic_forward.1} parent=1 // pred_check_branch
      %32 = sbr.rel (0) target = $region13
    $region12: #{critic_forward.1} parent=1 // pred_region
      _
    $region13: #{critic_forward.1} parent=1 // pred_fallthru
      _
    // Predicated region
    $region14: #{critic_forward.1} parent=1 // pred_check
      _
    $region15: #{critic_forward.1} parent=1 // pred_check_branch
      %34 = sbr.rel (0) target = $region17
    $region16: #{critic_forward.1} parent=1 // pred_region
      _
    $region17: #{critic_forward.1} parent=1 // pred_fallthru
      _
    // Predicated region
    $region18: #{critic_forward.1} parent=1 // pred_check
      _
    $region19: #{critic_forward.1} parent=1 // pred_check_branch
      %36 = sbr.rel (0) target = $region21
    $region20: #{critic_forward.1} parent=1 // pred_region
      _
    $region21: #{critic_forward.1} parent=1 // pred_fallthru
      _
    // Predicated region
    $region22: #{critic_forward.1} parent=1 // pred_check
      _
    $region23: #{critic_forward.1} parent=1 // pred_check_branch
      %38 = sbr.rel (0) target = $region25
    $region24: #{critic_forward.1} parent=1 // pred_region
      %40 = vsyncadd [#allocation7], 0
      %s41 = sshll.u32 %s5, 4
      %s42 = int_to_ptr.hbm [resolvable:$true] %s41
      %s43 = sshll.u32 [#allocation6], 4
      %s44 = int_to_ptr.vmem [resolvable:$true] %s43
      %49 = dma.hbm_to_vmem [thread:$0]  %s42, 512, %s44, [#allocation7], 128, 128, 8
    $region25: #{critic_forward.1} parent=1 // pred_fallthru
      _
    // Predicated region
    $region26: #{critic_forward.1} parent=1 // pred_check
      _
    $region27: #{critic_forward.1} parent=1 // pred_check_branch
      %51 = sbr.rel (0) target = $region29
    $region28: #{critic_forward.1} parent=1 // pred_region
      _
    $region29: #{critic_forward.1} parent=1 // pred_fallthru
      _
    // Predicated region
    $region30: #{critic_forward.1} parent=1 // pred_check
      _
    $region31: #{critic_forward.1} parent=1 // pred_check_branch
      %53 = sbr.rel (0) target = $region33
    $region32: #{critic_forward.1} parent=1 // pred_region
      _
    $region33: #{critic_forward.1} parent=1 // pred_fallthru
      _
    // Predicated region
    $region34: #{critic_forward.1} parent=1 // pred_check
      _
    $region35: #{critic_forward.1} parent=1 // pred_check_branch
      %55 = sbr.rel (0) target = $region37
    $region36: #{critic_forward.1} parent=1 // pred_region
      _
    $region37: #{critic_forward.1} parent=1 // pred_fallthru
      _
    // Predicated region
    $region38: #{critic_forward.1} parent=1 // pred_check
      _
    $region39: #{critic_forward.1} parent=1 // pred_check_branch
      %57 = sbr.rel (0) target = $region41
    $region40: #{critic_forward.1} parent=1 // pred_region
      %59 = dma.done [#allocation4], 128
    $region41: #{critic_forward.1} parent=1 // pred_fallthru
      _
    // Predicated region
    $region42: #{critic_forward.1} parent=1 // pred_check
      _
    $region43: #{critic_forward.1} parent=1 // pred_check_branch
      %61 = sbr.rel (0) target = $region45
    $region44: #{critic_forward.1} parent=1 // pred_region
      %63 = dma.done [#allocation7], 512
    $region45: #{critic_forward.1} parent=1 // pred_fallthru
      _
    %v64 = vld [vmem:[#allocation3] sm:$0xff]
    %v65 = vld [vmem:[%s2] sm:$0xff]
    %v66 = vld [vmem:[%s2 + $0x8] sm:$0xf]
    %v67 = vld [vmem:[%s1] sm:$0xff]
    %v68 = vld [vmem:[%s3] sm:$0xf]
    %vm69 = vcmask 31744
    %v71 = vsel %vm69, %v67, 0
    %vm73 = vcmask 1043456
    %v75 = vsel %vm73, %v68, 0
    %77 = vmatpush.msra.mxu0 0.0
    %78 = vmatpush.msra.mxu0 0.0
    %79 = vmatpush.msra.mxu0 0.0
    %80 = vmatpush.msra.mxu0 0.0
    %81 = vmatpush.msra.mxu0 0.0
    %82 = vmatpush.msra.mxu0 0.0
    %83 = vmatpush.msra.mxu0 0.0
    %84 = vmatpush.msra.mxu0 0.0
    %85 = vmatpush.msra.mxu0 0.0
    %86 = vmatpush.msra.mxu0 0.0
    %87 = vmatpush.msra.mxu0 0.0
    %88 = vmatpush.msra.mxu0 0.0
    %89 = vmatpush.msra.mxu0 0.0
    %90 = vmatpush.msra.mxu0 0.0
    %91 = vmatpush.msra.mxu0 0.0
    %92 = vmatpush.msra.mxu0 %v75
    %93 = vmatmul.f32.gmra.mxu0 %v71
    %v94 = vpop.f32.mrf.mxu0
    %v95 = vadd.f32 0.0, %v94
    %96 = vdwg.mxu0
    %vm97 = vcmask 97280
    %v99 = vsel %vm97, %v64, 0
    %v102 = vsel %vm73, %v66, 0
    %104 = vmatpush.msra.mxu0 0.0
    %105 = vmatpush.msra.mxu0 0.0
    %106 = vmatpush.msra.mxu0 0.0
    %107 = vmatpush.msra.mxu0 0.0
    %108 = vmatpush.msra.mxu0 0.0
    %109 = vmatpush.msra.mxu0 0.0
    %110 = vmatpush.msra.mxu0 0.0
    %111 = vmatpush.msra.mxu0 0.0
    %112 = vmatpush.msra.mxu0 0.0
    %113 = vmatpush.msra.mxu0 0.0
    %114 = vmatpush.msra.mxu0 0.0
    %115 = vmatpush.msra.mxu0 0.0
    %116 = vmatpush.msra.mxu0 0.0
    %117 = vmatpush.msra.mxu0 0.0
    %118 = vmatpush.msra.mxu0 %v102
    %119 = vmatpush.msra.mxu0 %v65
    %120 = vmatmul.f32.gmra.mxu0 %v99
    %v121 = vpop.f32.mrf.mxu0
    %v122 = vadd.f32 %v95, %v121
    %123 = vdwg.mxu0
    %v124 = vld [vmem:[%s4] sm:$0x1]
    %v126 = vperm.slane %v124, 0
    %v128 = vadd.f32 %v122, %v126
    %v129 = vmax.f32 %v128, 0.0
    %v130 = vld [vmem:[#allocation6] sm:$0xff]
    %v131 = vld [vmem:[#allocation6 + $0x8] sm:$0xff]
    %v132 = vld [vmem:[#allocation6 + $0x10] sm:$0xff]
    %v133 = vld [vmem:[#allocation6 + $0x18] sm:$0xff]
    %v134 = vld [vmem:[%s6] sm:$0x1]
    %v136 = vperm.slane %v134, 0
    %vm138 = vcmask 261120
    %v140 = vsel %vm138, %v129, 0
    %142 = vmatpush.msra.mxu0 0.0
    %143 = vmatpush.msra.mxu0 0.0
    %144 = vmatpush.msra.mxu0 0.0
    %145 = vmatpush.msra.mxu0 0.0
    %146 = vmatpush.msra.mxu0 0.0
    %147 = vmatpush.msra.mxu0 0.0
    %148 = vmatpush.msra.mxu0 0.0
    %149 = vmatpush.msra.mxu0 0.0
    %150 = vmatpush.msra.mxu0 0.0
    %151 = vmatpush.msra.mxu0 0.0
    %152 = vmatpush.msra.mxu0 0.0
    %153 = vmatpush.msra.mxu0 0.0
    %154 = vmatpush.msra.mxu0 %v133
    %155 = vmatpush.msra.mxu0 %v132
    %156 = vmatpush.msra.mxu0 %v131
    %157 = vmatpush.msra.mxu0 %v130
    %158 = vmatmul.f32.gmra.mxu0 %v140
    %v159 = vpop.f32.mrf.mxu0
    %v160 = vadd.f32 %v136, %v159
    %161 = vdwg.mxu0
    %v162 = vmax.f32 %v160, 0.0
    %v163 = vld [vmem:[%s7] sm:$0x1]
    %s164 = sld [smem:[#allocation2]]
    %v165 = vstv %s164
    %v167 = vsel %vm138, %v163, 0
    %v170 = vsel %vm138, %v162, 0
    %172 = vmatpush.xpose.msra.mxu0 0.0
    %173 = vmatpush.xpose.msra.mxu0 0.0
    %174 = vmatpush.xpose.msra.mxu0 0.0
    %175 = vmatpush.xpose.msra.mxu0 0.0
    %176 = vmatpush.xpose.msra.mxu0 0.0
    %177 = vmatpush.xpose.msra.mxu0 0.0
    %178 = vmatpush.xpose.msra.mxu0 0.0
    %179 = vmatpush.xpose.msra.mxu0 0.0
    %180 = vmatpush.xpose.msra.mxu0 0.0
    %181 = vmatpush.xpose.msra.mxu0 0.0
    %182 = vmatpush.xpose.msra.mxu0 0.0
    %183 = vmatpush.xpose.msra.mxu0 0.0
    %184 = vmatpush.xpose.msra.mxu0 0.0
    %185 = vmatpush.xpose.msra.mxu0 0.0
    %186 = vmatpush.xpose.msra.mxu0 0.0
    %187 = vmatpush.xpose.msra.mxu0 %v170
    %188 = vmatmul.f32.gmra.mxu0 %v167
    %v189 = vpop.f32.mrf.mxu0
    %v190 = vadd.f32 %v165, %v189
    %191 = vdwg.mxu0
    %vm192 = vcmask 57344
    %193 = vst.msk [vmem:[#allocation8] sm:$0x1] %vm192, %v190
    // Predicated region
    $region46: #{critic_forward.1} parent=1 // pred_check
      _
    $region47: #{critic_forward.1} parent=1 // pred_check_branch
      %195 = sbr.rel (0) target = $region49
    $region48: #{critic_forward.1} parent=1 // pred_region
      %197 = vsyncadd [#allocation5], 0
      %s199 = sshll.u32 [#allocation8], 4
      %s200 = int_to_ptr.vmem [resolvable:$true] %s199
      %s201 = sshll.u32 %s9, 4
      %s202 = int_to_ptr.hbm [resolvable:$true] %s201
      %204 = dma.vmem_to_hbm [thread:$0]  %s200, 16, %s202, [#allocation5]
    $region49: #{critic_forward.1} parent=1 // pred_fallthru
      _
    // Predicated region
    $region50: #{critic_forward.1} parent=1 // pred_check
      _
    $region51: #{critic_forward.1} parent=1 // pred_check_branch
      %206 = sbr.rel (0) target = $region53
    $region52: #{critic_forward.1} parent=1 // pred_region
      %208 = dma.done [#allocation5], 16
    $region53: #{critic_forward.1} parent=1 // pred_fallthru
      _
    %209 = vsyncpa [#allocation4], 1
    %210 = vsyncpa [#allocation7], 1
    %211 = vsyncpa [#allocation5], 1

</llo_original>
